<compile_context>
chip_gen: v6e
topology: v6e:2x2x1
jax: 0.10.0
libtpu: 0.0.40
codegen_flags: <defaults>
</compile_context>

<pallas_src>
import jax
import jax.numpy as jnp
import numpy as np
from jax.experimental import pallas as pl
from jax.experimental.pallas import tpu as pltpu

LOG_SIG_MAX = 2.0
LOG_SIG_MIN = -20.0

_DEFAULT_BATCH_TILE = 1024   # sweep 1024-2048; ~1-2 MB double-buffered VMEM


def _round_up(x, m):
    return ((x + m - 1) // m) * m


def _make_kernel(use_alpha, alpha_dim, compute_dtype):
    """Kernel closure over static config (alpha usage/width, matmul dtype)."""
    cdt = jnp.dtype(compute_dtype)

    def body(state_ref, alpha_ref, w1s_ref, w1a_ref, b1_ref, w2_ref, b2_ref,
             wm_ref, bm_ref, ws_ref, bs_ref, mean_ref, log_std_ref):
        # ---- layer 1: state @ W1_state (+ alpha term) + b1, relu ------------
        h = jnp.dot(state_ref[...].astype(cdt), w1s_ref[...],
                    preferred_element_type=jnp.float32)
        if use_alpha:
            if alpha_dim == 1:
                # alpha is (tb, 1): its share of the concat'd matmul reduces to
                # a broadcast multiply-add on the VPU (no concat, no matmul).
                h = h + (alpha_ref[...].astype(jnp.float32) *
                         w1a_ref[...].astype(jnp.float32))
            else:
                h = h + jnp.dot(alpha_ref[...].astype(cdt), w1a_ref[...],
                                preferred_element_type=jnp.float32)
        h1 = jnp.maximum(h + b1_ref[...], 0.0)

        # ---- layer 2 ---------------------------------------------------------
        h2 = jnp.dot(h1.astype(cdt), w2_ref[...],
                     preferred_element_type=jnp.float32) + b2_ref[...]
        h2 = jnp.maximum(h2, 0.0)
        h2c = h2.astype(cdt)

        # ---- heads: two small matmuls, direct (un-padded) stores -------------
        mean = jnp.dot(h2c, wm_ref[...],
                       preferred_element_type=jnp.float32) + bm_ref[...]
        lstd = jnp.dot(h2c, ws_ref[...],
                       preferred_element_type=jnp.float32) + bs_ref[...]
        mean_ref[...] = mean.astype(mean_ref.dtype)
        log_std_ref[...] = jnp.clip(
            lstd, LOG_SIG_MIN, LOG_SIG_MAX).astype(log_std_ref.dtype)

    if use_alpha:
        def kernel(state_ref, alpha_ref, w1s_ref, w1a_ref, b1_ref, w2_ref,
                   b2_ref, wm_ref, bm_ref, ws_ref, bs_ref, mean_ref, ls_ref):
            body(state_ref, alpha_ref, w1s_ref, w1a_ref, b1_ref, w2_ref,
                 b2_ref, wm_ref, bm_ref, ws_ref, bs_ref, mean_ref, ls_ref)
    else:
        def kernel(state_ref, w1s_ref, b1_ref, w2_ref, b2_ref,
                   wm_ref, bm_ref, ws_ref, bs_ref, mean_ref, ls_ref):
            body(state_ref, None, w1s_ref, None, b1_ref, w2_ref,
                 b2_ref, wm_ref, bm_ref, ws_ref, bs_ref, mean_ref, ls_ref)
    return kernel


def prepare_params(params, state_dim, *, alpha_embedding=True,
                   compute_dtype=jnp.bfloat16):
    """One-time weight prep (hoisted out of the per-call forward path)."""
    w1, b1, w2, b2, wm, bm, ws, bs = params
    cdt = jnp.dtype(compute_dtype)
    prepared = dict(
        alpha_embedding=bool(alpha_embedding),
        compute_dtype=cdt,
        b1=b1.astype(jnp.float32).reshape(1, -1),
        b2=b2.astype(jnp.float32).reshape(1, -1),
        bm=bm.astype(jnp.float32).reshape(1, -1),
        bs=bs.astype(jnp.float32).reshape(1, -1),
        w2=w2.astype(cdt),
        wm=wm.astype(cdt),
        ws=ws.astype(cdt),
    )
    if alpha_embedding:
        prepared['w1s'] = w1[:state_dim, :].astype(cdt)
        prepared['w1a'] = w1[state_dim:, :].astype(cdt)
        prepared['alpha_dim'] = int(w1.shape[0]) - int(state_dim)
    else:
        prepared['w1s'] = w1.astype(cdt)
        prepared['w1a'] = None
        prepared['alpha_dim'] = 0
    return prepared


def gaussian_policy_forward(state, alpha, prepared, *,
                            out_dtype=jnp.float32,
                            batch_tile=_DEFAULT_BATCH_TILE):
    """Returns (mean, log_std), matching GaussianPolicy.forward."""
    cdt = prepared['compute_dtype']
    use_alpha = prepared['alpha_embedding']
    alpha_dim = prepared['alpha_dim']
    B, state_dim = state.shape
    H = prepared['w2'].shape[0]
    A = prepared['wm'].shape[1]

    # Batch tiling: ragged last block is handled by the Pallas grid (no host
    # pad).  For 32 < B <= batch_tile we force >= 2 grid steps so the
    # "parallel" axis can be sharded across v7x's two TensorCores.
    if B <= 32:
        tb = B
    elif B <= batch_tile:
        tb = _round_up(pl.cdiv(B, 2), 8)
    else:
        tb = _round_up(min(batch_tile, B), 8)
    num_tiles = pl.cdiv(B, tb)

    def _stream(shape):     # streamed along the batch grid axis
        return pl.BlockSpec(shape, lambda i: (i, 0))

    def _resident(arr):     # same block every step -> stays in VMEM
        return pl.BlockSpec(arr.shape, lambda i: (0, 0))

    if use_alpha:
        args = (state, alpha, prepared['w1s'], prepared['w1a'], prepared['b1'],
                prepared['w2'], prepared['b2'], prepared['wm'], prepared['bm'],
                prepared['ws'], prepared['bs'])
        in_specs = ([_stream((tb, state_dim)), _stream((tb, alpha_dim))]
                    + [_resident(a) for a in args[2:]])
        weight_args = args[2:]
    else:
        args = (state, prepared['w1s'], prepared['b1'],
                prepared['w2'], prepared['b2'], prepared['wm'], prepared['bm'],
                prepared['ws'], prepared['bs'])
        in_specs = [_stream((tb, state_dim))] + [_resident(a) for a in args[1:]]
        weight_args = args[1:]

    flops = 2 * B * (state_dim * H + (alpha_dim if use_alpha else 0) * H
                     + H * H + 2 * H * A)
    bytes_accessed = state.size * state.dtype.itemsize
    if use_alpha:
        bytes_accessed += alpha.size * alpha.dtype.itemsize
    bytes_accessed += sum(int(np.prod(a.shape)) * a.dtype.itemsize
                          for a in weight_args)
    bytes_accessed += 2 * B * A * jnp.dtype(out_dtype).itemsize

    mean, log_std = pl.pallas_call(
        _make_kernel(use_alpha, alpha_dim, cdt),
        out_shape=(jax.ShapeDtypeStruct((B, A), out_dtype),
                   jax.ShapeDtypeStruct((B, A), out_dtype)),
        grid=(num_tiles,),
        in_specs=in_specs,
        out_specs=(_stream((tb, A)), _stream((tb, A))),
        compiler_params=pltpu.CompilerParams(
            dimension_semantics=("parallel",)),
        cost_estimate=pl.CostEstimate(flops=int(flops), transcendentals=0,
                                      bytes_accessed=int(bytes_accessed)),
    )(*args)
    return mean, log_std


# ----------------------------- params / reference -----------------------------

def xavier_uniform(key, fan_in, fan_out):
    # matches torch.nn.init.xavier_uniform_ with gain=1; stored as (in, out)
    limit = float(np.sqrt(6.0 / (fan_in + fan_out)))
    return jax.random.uniform(key, (fan_in, fan_out), jnp.float32, -limit, limit)


def init_params(key, num_inputs, num_actions, hidden_dim):
    k1, k2, k3, k4 = jax.random.split(key, 4)
    w1 = xavier_uniform(k1, num_inputs, hidden_dim)
    b1 = jnp.zeros((1, hidden_dim), jnp.float32)
    w2 = xavier_uniform(k2, hidden_dim, hidden_dim)
    b2 = jnp.zeros((1, hidden_dim), jnp.float32)
    wm = xavier_uniform(k3, hidden_dim, num_actions)
    bm = jnp.zeros((1, num_actions), jnp.float32)
    ws = xavier_uniform(k4, hidden_dim, num_actions)
    bs = jnp.zeros((1, num_actions), jnp.float32)
    return (w1, b1, w2, b2, wm, bm, ws, bs)


def _reference(state, alpha, params, alpha_embedding=True,
               compute_dtype=jnp.float32):
    cdt = jnp.dtype(compute_dtype)
    x = jnp.concatenate([state, alpha], axis=1) if alpha_embedding else state
    w1, b1, w2, b2, wm, bm, ws, bs = params
    dot = lambda a, b: jnp.dot(a.astype(cdt), b.astype(cdt),
                               preferred_element_type=jnp.float32)
    h1 = jax.nn.relu(dot(x, w1) + b1)
    h2 = jax.nn.relu(dot(h1, w2) + b2)
    mean = dot(h2, wm) + bm
    log_std = jnp.clip(dot(h2, ws) + bs, LOG_SIG_MIN, LOG_SIG_MAX)
    return mean, log_std


if __name__ == "__main__":
    batch = 4
    state_dim = 15     # state features
    alpha_dim = 1      # alpha concatenated along dim=1
    hidden_dim = 32
    num_actions = 8

    key = jax.random.PRNGKey(0)
    kp, kp2, ks, ka, kbig = jax.random.split(key, 5)

    params = init_params(kp, state_dim + alpha_dim, num_actions, hidden_dim)
    state = jax.random.normal(ks, (batch, state_dim), jnp.float32)
    alpha = jax.random.uniform(ka, (batch, alpha_dim), jnp.float32)

    # 1) float32 matmul path: tight check against the pure-JAX reference.
    prep_f32 = prepare_params(params, state_dim, alpha_embedding=True,
                              compute_dtype=jnp.float32)
    mean32, log_std32 = gaussian_policy_forward(state, alpha, prep_f32)
    jax.block_until_ready((mean32, log_std32))
    ref_m, ref_l = _reference(state, alpha, params, True, jnp.float32)
    assert np.allclose(np.asarray(mean32), np.asarray(ref_m), atol=1e-4)
    assert np.allclose(np.asarray(log_std32), np.asarray(ref_l), atol=1e-4)

    # 2) bfloat16 matmul path (default): check against a bf16-matmul reference.
    prep_bf16 = prepare_params(params, state_dim, alpha_embedding=True,
                               compute_dtype=jnp.bfloat16)
    mean_bf, log_std_bf = gaussian_policy_forward(state, alpha, prep_bf16)
    jax.block_until_ready((mean_bf, log_std_bf))
    ref_m_bf, ref_l_bf = _reference(state, alpha, params, True, jnp.bfloat16)
    assert np.allclose(np.asarray(mean_bf), np.asarray(ref_m_bf),
                       atol=2e-2, rtol=2e-2)
    assert np.allclose(np.asarray(log_std_bf), np.asarray(ref_l_bf),
                       atol=2e-2, rtol=2e-2)

    # 3) alpha_embedding=False path.
    params_na = init_params(kp2, state_dim, num_actions, hidden_dim)
    prep_na = prepare_params(params_na, state_dim, alpha_embedding=False,
                             compute_dtype=jnp.float32)
    mean_na, log_std_na = gaussian_policy_forward(state, None, prep_na)
    jax.block_until_ready((mean_na, log_std_na))
    ref_m_na, ref_l_na = _reference(state, None, params_na, False, jnp.float32)
    assert np.allclose(np.asarray(mean_na), np.asarray(ref_m_na), atol=1e-4)
    assert np.allclose(np.asarray(log_std_na), np.asarray(ref_l_na), atol=1e-4)

    # 4) Multi-tile + ragged last batch block (no host-side padding).
    B_big = 300
    kbs, kba = jax.random.split(kbig)
    state_big = jax.random.normal(kbs, (B_big, state_dim), jnp.float32)
    alpha_big = jax.random.uniform(kba, (B_big, alpha_dim), jnp.float32)
    mean_big, log_std_big = gaussian_policy_forward(
        state_big, alpha_big, prep_f32, batch_tile=128)
    jax.block_until_ready((mean_big, log_std_big))
    ref_mb, ref_lb = _reference(state_big, alpha_big, params, True, jnp.float32)
    assert np.allclose(np.asarray(mean_big), np.asarray(ref_mb), atol=1e-4)
    assert np.allclose(np.asarray(log_std_big), np.asarray(ref_lb), atol=1e-4)

    assert mean32.shape == (batch, num_actions)
    assert log_std32.shape == (batch, num_actions)

    # TODO(synk): sample()/get_log_prob() (Normal rsample, tanh squash, log-prob)
    # are host-side distribution logic, not part of the hot-path kernel.

    print("KERNEL_OK")
</pallas_src>

<mosaic_0001>
module attributes {stable_mosaic.version = 11 : i64} {
  func.func @kernel(%arg0: i32, %arg1: memref<4x15xf32, #tpu.memory_space<vmem>>, %arg2: memref<4x1xf32, #tpu.memory_space<vmem>>, %arg3: memref<15x32xf32, #tpu.memory_space<vmem>>, %arg4: memref<1x32xf32, #tpu.memory_space<vmem>>, %arg5: memref<1x32xf32, #tpu.memory_space<vmem>>, %arg6: memref<32x32xf32, #tpu.memory_space<vmem>>, %arg7: memref<1x32xf32, #tpu.memory_space<vmem>>, %arg8: memref<32x8xf32, #tpu.memory_space<vmem>>, %arg9: memref<1x8xf32, #tpu.memory_space<vmem>>, %arg10: memref<32x8xf32, #tpu.memory_space<vmem>>, %arg11: memref<1x8xf32, #tpu.memory_space<vmem>>, %arg12: memref<4x8xf32, #tpu.memory_space<vmem>>, %arg13: memref<4x8xf32, #tpu.memory_space<vmem>>) attributes {dimension_semantics = [#tpu.dimension_semantics<parallel>], iteration_bounds = array<i64: 1>, scalar_prefetch = 0 : i64, scratch_operands = 0 : i64, tpu.core_type = #tpu.core_type<tc>, window_params = [{transform_indices = @transform_0, window_bounds = array<i64: 4, 15>}, {transform_indices = @transform_1, window_bounds = array<i64: 4, 1>}, {pipeline_mode = #tpu.pipeline_mode<synchronous>, transform_indices = @transform_2, window_bounds = array<i64: 15, 32>}, {pipeline_mode = #tpu.pipeline_mode<synchronous>, transform_indices = @transform_3, window_bounds = array<i64: 1, 32>}, {pipeline_mode = #tpu.pipeline_mode<synchronous>, transform_indices = @transform_4, window_bounds = array<i64: 1, 32>}, {pipeline_mode = #tpu.pipeline_mode<synchronous>, transform_indices = @transform_5, window_bounds = array<i64: 32, 32>}, {pipeline_mode = #tpu.pipeline_mode<synchronous>, transform_indices = @transform_6, window_bounds = array<i64: 1, 32>}, {pipeline_mode = #tpu.pipeline_mode<synchronous>, transform_indices = @transform_7, window_bounds = array<i64: 32, 8>}, {pipeline_mode = #tpu.pipeline_mode<synchronous>, transform_indices = @transform_8, window_bounds = array<i64: 1, 8>}, {pipeline_mode = #tpu.pipeline_mode<synchronous>, transform_indices = @transform_9, window_bounds = array<i64: 32, 8>}, {pipeline_mode = #tpu.pipeline_mode<synchronous>, transform_indices = @transform_10, window_bounds = array<i64: 1, 8>}, {transform_indices = @transform_11, window_bounds = array<i64: 4, 8>}, {transform_indices = @transform_12, window_bounds = array<i64: 4, 8>}]} {
    %c0 = arith.constant 0 : index
    %c0_0 = arith.constant 0 : index
    %0 = vector.load %arg1[%c0, %c0_0] : memref<4x15xf32, #tpu.memory_space<vmem>>, vector<4x15xf32>
    %c0_1 = arith.constant 0 : index
    %c0_2 = arith.constant 0 : index
    %1 = vector.load %arg3[%c0_1, %c0_2] : memref<15x32xf32, #tpu.memory_space<vmem>>, vector<15x32xf32>
    %cst = arith.constant dense<0.000000e+00> : vector<4x32xf32>
    %2 = tpu.matmul %0, %1, %cst {dimension_numbers = #tpu.dot_dimension_numbers<[1], [0], [0], [1], [0, 0, 1, 1], [], []>} : vector<4x15xf32>, vector<15x32xf32>, vector<4x32xf32> -> vector<4x32xf32>
    %c0_3 = arith.constant 0 : index
    %c0_4 = arith.constant 0 : index
    %3 = vector.load %arg2[%c0_3, %c0_4] : memref<4x1xf32, #tpu.memory_space<vmem>>, vector<4x1xf32>
    %c0_5 = arith.constant 0 : index
    %c0_6 = arith.constant 0 : index
    %4 = vector.load %arg4[%c0_5, %c0_6] : memref<1x32xf32, #tpu.memory_space<vmem>>, vector<1x32xf32>
    %5 = vector.broadcast %3 : vector<4x1xf32> to vector<4x32xf32>
    %6 = vector.broadcast %4 : vector<1x32xf32> to vector<4x32xf32>
    %7 = arith.mulf %5, %6 : vector<4x32xf32>
    %8 = arith.addf %2, %7 : vector<4x32xf32>
    %c0_7 = arith.constant 0 : index
    %c0_8 = arith.constant 0 : index
    %9 = vector.load %arg5[%c0_7, %c0_8] : memref<1x32xf32, #tpu.memory_space<vmem>>, vector<1x32xf32>
    %10 = vector.broadcast %9 : vector<1x32xf32> to vector<4x32xf32>
    %11 = arith.addf %8, %10 : vector<4x32xf32>
    %cst_9 = arith.constant 0.000000e+00 : f32
    %12 = vector.broadcast %cst_9 : f32 to vector<4x32xf32>
    %13 = arith.maximumf %11, %12 : vector<4x32xf32>
    %c0_10 = arith.constant 0 : index
    %c0_11 = arith.constant 0 : index
    %14 = vector.load %arg6[%c0_10, %c0_11] : memref<32x32xf32, #tpu.memory_space<vmem>>, vector<32x32xf32>
    %cst_12 = arith.constant dense<0.000000e+00> : vector<4x32xf32>
    %15 = tpu.matmul %13, %14, %cst_12 {dimension_numbers = #tpu.dot_dimension_numbers<[1], [0], [0], [1], [0, 0, 1, 1], [], []>} : vector<4x32xf32>, vector<32x32xf32>, vector<4x32xf32> -> vector<4x32xf32>
    %c0_13 = arith.constant 0 : index
    %c0_14 = arith.constant 0 : index
    %16 = vector.load %arg7[%c0_13, %c0_14] : memref<1x32xf32, #tpu.memory_space<vmem>>, vector<1x32xf32>
    %17 = vector.broadcast %16 : vector<1x32xf32> to vector<4x32xf32>
    %18 = arith.addf %15, %17 : vector<4x32xf32>
    %cst_15 = arith.constant 0.000000e+00 : f32
    %19 = vector.broadcast %cst_15 : f32 to vector<4x32xf32>
    %20 = arith.maximumf %18, %19 : vector<4x32xf32>
    %c0_16 = arith.constant 0 : index
    %c0_17 = arith.constant 0 : index
    %21 = vector.load %arg8[%c0_16, %c0_17] : memref<32x8xf32, #tpu.memory_space<vmem>>, vector<32x8xf32>
    %cst_18 = arith.constant dense<0.000000e+00> : vector<4x8xf32>
    %22 = tpu.matmul %20, %21, %cst_18 {dimension_numbers = #tpu.dot_dimension_numbers<[1], [0], [0], [1], [0, 0, 1, 1], [], []>} : vector<4x32xf32>, vector<32x8xf32>, vector<4x8xf32> -> vector<4x8xf32>
    %c0_19 = arith.constant 0 : index
    %c0_20 = arith.constant 0 : index
    %23 = vector.load %arg9[%c0_19, %c0_20] : memref<1x8xf32, #tpu.memory_space<vmem>>, vector<1x8xf32>
    %24 = vector.broadcast %23 : vector<1x8xf32> to vector<4x8xf32>
    %25 = arith.addf %22, %24 : vector<4x8xf32>
    %c0_21 = arith.constant 0 : index
    %c0_22 = arith.constant 0 : index
    %26 = vector.load %arg10[%c0_21, %c0_22] : memref<32x8xf32, #tpu.memory_space<vmem>>, vector<32x8xf32>
    %cst_23 = arith.constant dense<0.000000e+00> : vector<4x8xf32>
    %27 = tpu.matmul %20, %26, %cst_23 {dimension_numbers = #tpu.dot_dimension_numbers<[1], [0], [0], [1], [0, 0, 1, 1], [], []>} : vector<4x32xf32>, vector<32x8xf32>, vector<4x8xf32> -> vector<4x8xf32>
    %c0_24 = arith.constant 0 : index
    %c0_25 = arith.constant 0 : index
    %28 = vector.load %arg11[%c0_24, %c0_25] : memref<1x8xf32, #tpu.memory_space<vmem>>, vector<1x8xf32>
    %29 = vector.broadcast %28 : vector<1x8xf32> to vector<4x8xf32>
    %30 = arith.addf %27, %29 : vector<4x8xf32>
    %c0_26 = arith.constant 0 : index
    %c0_27 = arith.constant 0 : index
    %31 = vector.load %arg12[%c0_26, %c0_27] : memref<4x8xf32, #tpu.memory_space<vmem>>, vector<4x8xf32>
    tpu.vector_store %arg12[%c0_26, %c0_27], %25 {strides = array<i32>} : memref<4x8xf32, #tpu.memory_space<vmem>>, vector<4x8xf32>,
    %cst_28 = arith.constant -2.000000e+01 : f32
    %cst_29 = arith.constant 2.000000e+00 : f32
    %32 = vector.broadcast %cst_28 : f32 to vector<4x8xf32>
    %33 = arith.maximumf %32, %30 : vector<4x8xf32>
    %34 = vector.broadcast %cst_29 : f32 to vector<4x8xf32>
    %35 = arith.minimumf %34, %33 : vector<4x8xf32>
    %c0_30 = arith.constant 0 : index
    %c0_31 = arith.constant 0 : index
    %36 = vector.load %arg13[%c0_30, %c0_31] : memref<4x8xf32, #tpu.memory_space<vmem>>, vector<4x8xf32>
    tpu.vector_store %arg13[%c0_30, %c0_31], %35 {strides = array<i32>} : memref<4x8xf32, #tpu.memory_space<vmem>>, vector<4x8xf32>,
    return
  }
  func.func @transform_0(%arg0: i32) -> (i32, i32) {
    %c0_i32 = arith.constant 0 : i32
    %c0_i32_0 = arith.constant 0 : i32
    return %arg0, %c0_i32 : i32, i32
  }
  func.func @transform_1(%arg0: i32) -> (i32, i32) {
    %c0_i32 = arith.constant 0 : i32
    %c0_i32_0 = arith.constant 0 : i32
    return %arg0, %c0_i32 : i32, i32
  }
  func.func @transform_2(%arg0: i32) -> (i32, i32) {
    %c0_i32 = arith.constant 0 : i32
    %c0_i32_0 = arith.constant 0 : i32
    %c0_i32_1 = arith.constant 0 : i32
    return %c0_i32, %c0_i32_0 : i32, i32
  }
  func.func @transform_3(%arg0: i32) -> (i32, i32) {
    %c0_i32 = arith.constant 0 : i32
    %c0_i32_0 = arith.constant 0 : i32
    %c0_i32_1 = arith.constant 0 : i32
    return %c0_i32, %c0_i32_0 : i32, i32
  }
  func.func @transform_4(%arg0: i32) -> (i32, i32) {
    %c0_i32 = arith.constant 0 : i32
    %c0_i32_0 = arith.constant 0 : i32
    %c0_i32_1 = arith.constant 0 : i32
    return %c0_i32, %c0_i32_0 : i32, i32
  }
  func.func @transform_5(%arg0: i32) -> (i32, i32) {
    %c0_i32 = arith.constant 0 : i32
    %c0_i32_0 = arith.constant 0 : i32
    %c0_i32_1 = arith.constant 0 : i32
    return %c0_i32, %c0_i32_0 : i32, i32
  }
  func.func @transform_6(%arg0: i32) -> (i32, i32) {
    %c0_i32 = arith.constant 0 : i32
    %c0_i32_0 = arith.constant 0 : i32
    %c0_i32_1 = arith.constant 0 : i32
    return %c0_i32, %c0_i32_0 : i32, i32
  }
  func.func @transform_7(%arg0: i32) -> (i32, i32) {
    %c0_i32 = arith.constant 0 : i32
    %c0_i32_0 = arith.constant 0 : i32
    %c0_i32_1 = arith.constant 0 : i32
    return %c0_i32, %c0_i32_0 : i32, i32
  }
  func.func @transform_8(%arg0: i32) -> (i32, i32) {
    %c0_i32 = arith.constant 0 : i32
    %c0_i32_0 = arith.constant 0 : i32
    %c0_i32_1 = arith.constant 0 : i32
    return %c0_i32, %c0_i32_0 : i32, i32
  }
  func.func @transform_9(%arg0: i32) -> (i32, i32) {
    %c0_i32 = arith.constant 0 : i32
    %c0_i32_0 = arith.constant 0 : i32
    %c0_i32_1 = arith.constant 0 : i32
    return %c0_i32, %c0_i32_0 : i32, i32
  }
  func.func @transform_10(%arg0: i32) -> (i32, i32) {
    %c0_i32 = arith.constant 0 : i32
    %c0_i32_0 = arith.constant 0 : i32
    %c0_i32_1 = arith.constant 0 : i32
    return %c0_i32, %c0_i32_0 : i32, i32
  }
  func.func @transform_11(%arg0: i32) -> (i32, i32) {
    %c0_i32 = arith.constant 0 : i32
    %c0_i32_0 = arith.constant 0 : i32
    return %arg0, %c0_i32 : i32, i32
  }
  func.func @transform_12(%arg0: i32) -> (i32, i32) {
    %c0_i32 = arith.constant 0 : i32
    %c0_i32_0 = arith.constant 0 : i32
    return %arg0, %c0_i32 : i32, i32
  }
}

</mosaic_0001>

<llo_original>
// kernel: tpu_custom_call.1
$region0: #{tpu_custom_call.1}
  #allocation0 [shape = 'u32[]', space=smem, size = 0x4, offset = 0x4, fixed_abs, tag = 'smem constant byte address 0x4 - core index']
  #allocation1 [shape = 'u32[144,128]{1,0:T(1,128)}', space=vmem, size = 0x12000, scoped, tag = 'internal scratch']
  %s0 = inlined_call_operand.vmem [shape: f32[4,15], index: 0, kind: input, shape index: {}]
  %s1 = inlined_call_operand.vmem [shape: f32[4,1], index: 1, kind: input, shape index: {}]
  %s2 = inlined_call_operand.vmem [shape: f32[15,32], index: 2, kind: input, shape index: {}]
  %s3 = inlined_call_operand.vmem [shape: f32[1,32], index: 3, kind: input, shape index: {}]
  %s4 = inlined_call_operand.vmem [shape: f32[1,32], index: 4, kind: input, shape index: {}]
  %s5 = inlined_call_operand.vmem [shape: f32[32,32], index: 5, kind: input, shape index: {}]
  %s6 = inlined_call_operand.vmem [shape: f32[1,32], index: 6, kind: input, shape index: {}]
  %s7 = inlined_call_operand.vmem [shape: f32[32,8], index: 7, kind: input, shape index: {}]
  %s8 = inlined_call_operand.vmem [shape: f32[1,8], index: 8, kind: input, shape index: {}]
  %s9 = inlined_call_operand.vmem [shape: f32[32,8], index: 9, kind: input, shape index: {}]
  %s10 = inlined_call_operand.vmem [shape: f32[1,8], index: 10, kind: input, shape index: {}]
  %s11 = inlined_call_operand.hbm [shape: f32[4,8], index: 11, kind: output, shape index: {0}]
  %s12 = inlined_call_operand.hbm [shape: f32[4,8], index: 12, kind: output, shape index: {1}]
  %13 = xla_tuple %s11, %s12
  %s14 = sld [smem:[#allocation0]]
  $region62: #{tpu_custom_call.1} parent=0
    _
  %s16 = ssub.s32 1, %s14
  %s17 = scalar_select 0, %s16, %s14
  $region1: #{tpu_custom_call.1} parent=0
    #allocation2 [shape = 'u8[2048]{0}', space=vmem, size = 0x800, scoped, tag = 'output window, operand 0, single buffered']
    #allocation3 [shape = 's32[1]{0}', space=sflag, size = 0x4, scoped, tag = 'scoped memory for tpu_custom_call.1']
    #allocation4 [shape = 'u8[2048]{0}', space=vmem, size = 0x800, scoped, tag = 'output window, operand 1, single buffered']
    #allocation5 [shape = 's32[1]{0}', space=sflag, size = 0x4, scoped, tag = 'scoped memory for tpu_custom_call.1']
    %18 = vsyncpa [#allocation3], 0
    %19 = vsyncpa [#allocation5], 0
    // Predicated region
    $region2: #{tpu_custom_call.1} parent=1 // pred_check
      _
    $region3: #{tpu_custom_call.1} parent=1 // pred_check_branch
      %21 = sbr.rel (0) target = $region5
    $region4: #{tpu_custom_call.1} parent=1 // pred_region
      _
    $region5: #{tpu_custom_call.1} parent=1 // pred_fallthru
      _
    // Predicated region
    $region6: #{tpu_custom_call.1} parent=1 // pred_check
      _
    $region7: #{tpu_custom_call.1} parent=1 // pred_check_branch
      %23 = sbr.rel (0) target = $region9
    $region8: #{tpu_custom_call.1} parent=1 // pred_region
      _
    $region9: #{tpu_custom_call.1} parent=1 // pred_fallthru
      _
    // Predicated region
    $region10: #{tpu_custom_call.1} parent=1 // pred_check
      _
    $region11: #{tpu_custom_call.1} parent=1 // pred_check_branch
      %25 = sbr.rel (0) target = $region13
    $region12: #{tpu_custom_call.1} parent=1 // pred_region
      _
    $region13: #{tpu_custom_call.1} parent=1 // pred_fallthru
      _
    // Predicated region
    $region14: #{tpu_custom_call.1} parent=1 // pred_check
      _
    $region15: #{tpu_custom_call.1} parent=1 // pred_check_branch
      %27 = sbr.rel (0) target = $region17
    $region16: #{tpu_custom_call.1} parent=1 // pred_region
      _
    $region17: #{tpu_custom_call.1} parent=1 // pred_fallthru
      _
    // Predicated region
    $region18: #{tpu_custom_call.1} parent=1 // pred_check
      _
    $region19: #{tpu_custom_call.1} parent=1 // pred_check_branch
      %29 = sbr.rel (0) target = $region21
    $region20: #{tpu_custom_call.1} parent=1 // pred_region
      _
    $region21: #{tpu_custom_call.1} parent=1 // pred_fallthru
      _
    // Predicated region
    $region22: #{tpu_custom_call.1} parent=1 // pred_check
      _
    $region23: #{tpu_custom_call.1} parent=1 // pred_check_branch
      %31 = sbr.rel (0) target = $region25
    $region24: #{tpu_custom_call.1} parent=1 // pred_region
      _
    $region25: #{tpu_custom_call.1} parent=1 // pred_fallthru
      _
    // Predicated region
    $region26: #{tpu_custom_call.1} parent=1 // pred_check
      _
    $region27: #{tpu_custom_call.1} parent=1 // pred_check_branch
      %33 = sbr.rel (0) target = $region29
    $region28: #{tpu_custom_call.1} parent=1 // pred_region
      _
    $region29: #{tpu_custom_call.1} parent=1 // pred_fallthru
      _
    // Predicated region
    $region30: #{tpu_custom_call.1} parent=1 // pred_check
      _
    $region31: #{tpu_custom_call.1} parent=1 // pred_check_branch
      %35 = sbr.rel (0) target = $region33
    $region32: #{tpu_custom_call.1} parent=1 // pred_region
      _
    $region33: #{tpu_custom_call.1} parent=1 // pred_fallthru
      _
    // Predicated region
    $region34: #{tpu_custom_call.1} parent=1 // pred_check
      _
    $region35: #{tpu_custom_call.1} parent=1 // pred_check_branch
      %37 = sbr.rel (0) target = $region37
    $region36: #{tpu_custom_call.1} parent=1 // pred_region
      _
    $region37: #{tpu_custom_call.1} parent=1 // pred_fallthru
      _
    // Predicated region
    $region38: #{tpu_custom_call.1} parent=1 // pred_check
      _
    $region39: #{tpu_custom_call.1} parent=1 // pred_check_branch
      %39 = sbr.rel (0) target = $region41
    $region40: #{tpu_custom_call.1} parent=1 // pred_region
      _
    $region41: #{tpu_custom_call.1} parent=1 // pred_fallthru
      _
    // Predicated region
    $region42: #{tpu_custom_call.1} parent=1 // pred_check
      _
    $region43: #{tpu_custom_call.1} parent=1 // pred_check_branch
      %41 = sbr.rel (0) target = $region45
    $region44: #{tpu_custom_call.1} parent=1 // pred_region
      _
    $region45: #{tpu_custom_call.1} parent=1 // pred_fallthru
      _
    %v42 = vld [vmem:[%s0] sm:$0xf]
    %v43 = vld [vmem:[%s2] sm:$0xff]
    %v44 = vld [vmem:[%s2 + $0x8] sm:$0x7f]
    %v45 = vld [vmem:[%s1] sm:$0xf]
    %v46 = vld [vmem:[%s3] sm:$0x1]
    %48 = vset.pattern.permute.xlu0 0
    %49 = vperm.xlu0 %48, %v45
    %v50 = vpop.permute.xlu0 %49
    %v53 = vlaneseq
    %v54 = vshrl.u32 %v53, 7
    %v55 = vsub.s32 0, %v54
    %v56 = vrot.slane %v46, %v55
    %v58 = vmul.f32 %v50, %v56
    %vm59 = vcmask 121856
    %v61 = vsel %vm59, %v42, 0
    %vm63 = vcmask 1046528
    %v65 = vsel %vm63, %v44, 0
    %67 = vmatprep.subr.mxu0 0.0
    %68 = vmatpush1.msra.mxu0 0.0
    %69 = vmatprep.subr.mxu0 0.0
    %70 = vmatpush1.msra.mxu0 0.0
    %71 = vmatprep.subr.mxu0 0.0
    %72 = vmatpush1.msra.mxu0 0.0
    %73 = vmatprep.subr.mxu0 0.0
    %74 = vmatpush1.msra.mxu0 0.0
    %75 = vmatprep.subr.mxu0 0.0
    %76 = vmatpush1.msra.mxu0 0.0
    %77 = vmatprep.subr.mxu0 0.0
    %78 = vmatpush1.msra.mxu0 0.0
    %79 = vmatprep.subr.mxu0 0.0
    %80 = vmatpush1.msra.mxu0 0.0
    %81 = vmatprep.subr.mxu0 0.0
    %82 = vmatpush1.msra.mxu0 0.0
    %83 = vmatprep.subr.mxu0 0.0
    %84 = vmatpush1.msra.mxu0 0.0
    %85 = vmatprep.subr.mxu0 0.0
    %86 = vmatpush1.msra.mxu0 0.0
    %87 = vmatprep.subr.mxu0 0.0
    %88 = vmatpush1.msra.mxu0 0.0
    %89 = vmatprep.subr.mxu0 0.0
    %90 = vmatpush1.msra.mxu0 0.0
    %91 = vmatprep.subr.mxu0 0.0
    %92 = vmatpush1.msra.mxu0 0.0
    %93 = vmatprep.subr.mxu0 0.0
    %94 = vmatpush1.msra.mxu0 0.0
    %95 = vmatprep.subr.mxu0 0.0
    %96 = vmatpush1.msra.mxu0 %v65
    %97 = vmatprep.subr.mxu0 0.0
    %98 = vmatpush1.msra.mxu0 %v43
    %99 = vmatprep.subr.mxu0 0.0
    %100 = vmatpush2.msra.mxu0 0.0
    %101 = vmatprep.subr.mxu0 0.0
    %102 = vmatpush2.msra.mxu0 0.0
    %103 = vmatprep.subr.mxu0 0.0
    %104 = vmatpush2.msra.mxu0 0.0
    %105 = vmatprep.subr.mxu0 0.0
    %106 = vmatpush2.msra.mxu0 0.0
    %107 = vmatprep.subr.mxu0 0.0
    %108 = vmatpush2.msra.mxu0 0.0
    %109 = vmatprep.subr.mxu0 0.0
    %110 = vmatpush2.msra.mxu0 0.0
    %111 = vmatprep.subr.mxu0 0.0
    %112 = vmatpush2.msra.mxu0 0.0
    %113 = vmatprep.subr.mxu0 0.0
    %114 = vmatpush2.msra.mxu0 0.0
    %115 = vmatprep.subr.mxu0 0.0
    %116 = vmatpush2.msra.mxu0 0.0
    %117 = vmatprep.subr.mxu0 0.0
    %118 = vmatpush2.msra.mxu0 0.0
    %119 = vmatprep.subr.mxu0 0.0
    %120 = vmatpush2.msra.mxu0 0.0
    %121 = vmatprep.subr.mxu0 0.0
    %122 = vmatpush2.msra.mxu0 0.0
    %123 = vmatprep.subr.mxu0 0.0
    %124 = vmatpush2.msra.mxu0 0.0
    %125 = vmatprep.subr.mxu0 0.0
    %126 = vmatpush2.msra.mxu0 0.0
    %127 = vmatprep.subr.mxu0 0.0
    %128 = vmatpush2.msra.mxu0 0.0
    %129 = vmatprep.subr.mxu0 0.0
    %130 = vmatpush2.msra.mxu0 0.0
    %131 = vmatprep.mubr.f32.mxu0 0.0
    %132 = vmatmul.mubr.f32.gmra.mxu0 %v61
    %v133 = vpop.f32.mrf.mxu0
    %v134 = vadd.f32 %v58, %v133
    %v135 = vpop.f32.mrf.mxu0
    %136 = vdwg.mxu0
    %v137 = vld [vmem:[%s4] sm:$0x1]
    %v139 = vlaneseq
    %v140 = vshrl.u32 %v139, 7
    %v141 = vsub.s32 0, %v140
    %v142 = vrot.slane %v137, %v141
    %v144 = vadd.f32 %v134, %v142
    %v145 = vmax.f32 %v144, 0.0
    %v146 = vld [vmem:[%s5] sm:$0xff]
    %v147 = vld [vmem:[%s5 + $0x8] sm:$0xff]
    %v148 = vld [vmem:[%s5 + $0x10] sm:$0xff]
    %v149 = vld [vmem:[%s5 + $0x18] sm:$0xff]
    %v150 = vld [vmem:[%s6] sm:$0x1]
    %v152 = vlaneseq
    %v153 = vshrl.u32 %v152, 7
    %v154 = vsub.s32 0, %v153
    %v155 = vrot.slane %v150, %v154
    %vm157 = vcmask 261120
    %v159 = vsel %vm157, %v145, 0
    %161 = vmatprep.subr.mxu0 0.0
    %162 = vmatpush1.msra.mxu0 0.0
    %163 = vmatprep.subr.mxu0 0.0
    %164 = vmatpush1.msra.mxu0 0.0
    %165 = vmatprep.subr.mxu0 0.0
    %166 = vmatpush1.msra.mxu0 0.0
    %167 = vmatprep.subr.mxu0 0.0
    %168 = vmatpush1.msra.mxu0 0.0
    %169 = vmatprep.subr.mxu0 0.0
    %170 = vmatpush1.msra.mxu0 0.0
    %171 = vmatprep.subr.mxu0 0.0
    %172 = vmatpush1.msra.mxu0 0.0
    %173 = vmatprep.subr.mxu0 0.0
    %174 = vmatpush1.msra.mxu0 0.0
    %175 = vmatprep.subr.mxu0 0.0
    %176 = vmatpush1.msra.mxu0 0.0
    %177 = vmatprep.subr.mxu0 0.0
    %178 = vmatpush1.msra.mxu0 0.0
    %179 = vmatprep.subr.mxu0 0.0
    %180 = vmatpush1.msra.mxu0 0.0
    %181 = vmatprep.subr.mxu0 0.0
    %182 = vmatpush1.msra.mxu0 0.0
    %183 = vmatprep.subr.mxu0 0.0
    %184 = vmatpush1.msra.mxu0 0.0
    %185 = vmatprep.subr.mxu0 0.0
    %186 = vmatpush1.msra.mxu0 %v149
    %187 = vmatprep.subr.mxu0 0.0
    %188 = vmatpush1.msra.mxu0 %v148
    %189 = vmatprep.subr.mxu0 0.0
    %190 = vmatpush1.msra.mxu0 %v147
    %191 = vmatprep.subr.mxu0 0.0
    %192 = vmatpush1.msra.mxu0 %v146
    %193 = vmatprep.subr.mxu0 0.0
    %194 = vmatpush2.msra.mxu0 0.0
    %195 = vmatprep.subr.mxu0 0.0
    %196 = vmatpush2.msra.mxu0 0.0
    %197 = vmatprep.subr.mxu0 0.0
    %198 = vmatpush2.msra.mxu0 0.0
    %199 = vmatprep.subr.mxu0 0.0
    %200 = vmatpush2.msra.mxu0 0.0
    %201 = vmatprep.subr.mxu0 0.0
    %202 = vmatpush2.msra.mxu0 0.0
    %203 = vmatprep.subr.mxu0 0.0
    %204 = vmatpush2.msra.mxu0 0.0
    %205 = vmatprep.subr.mxu0 0.0
    %206 = vmatpush2.msra.mxu0 0.0
    %207 = vmatprep.subr.mxu0 0.0
    %208 = vmatpush2.msra.mxu0 0.0
    %209 = vmatprep.subr.mxu0 0.0
    %210 = vmatpush2.msra.mxu0 0.0
    %211 = vmatprep.subr.mxu0 0.0
    %212 = vmatpush2.msra.mxu0 0.0
    %213 = vmatprep.subr.mxu0 0.0
    %214 = vmatpush2.msra.mxu0 0.0
    %215 = vmatprep.subr.mxu0 0.0
    %216 = vmatpush2.msra.mxu0 0.0
    %217 = vmatprep.subr.mxu0 0.0
    %218 = vmatpush2.msra.mxu0 0.0
    %219 = vmatprep.subr.mxu0 0.0
    %220 = vmatpush2.msra.mxu0 0.0
    %221 = vmatprep.subr.mxu0 0.0
    %222 = vmatpush2.msra.mxu0 0.0
    %223 = vmatprep.subr.mxu0 0.0
    %224 = vmatpush2.msra.mxu0 0.0
    %225 = vmatprep.mubr.f32.mxu0 0.0
    %226 = vmatmul.mubr.f32.gmra.mxu0 %v159
    %v227 = vpop.f32.mrf.mxu0
    %v228 = vadd.f32 %v155, %v227
    %v229 = vpop.f32.mrf.mxu0
    %230 = vdwg.mxu0
    %v231 = vmax.f32 %v228, 0.0
    %v232 = vld [vmem:[%s7] sm:$0xff]
    %v233 = vld [vmem:[%s7 + $0x8] sm:$0xff]
    %v234 = vld [vmem:[%s7 + $0x10] sm:$0xff]
    %v235 = vld [vmem:[%s7 + $0x18] sm:$0xff]
    %v236 = vld [vmem:[%s8] sm:$0x1]
    %v238 = vlaneseq
    %v239 = vshrl.u32 %v238, 7
    %v240 = vsub.s32 0, %v239
    %v241 = vrot.slane %v236, %v240
    %v244 = vsel %vm157, %v231, 0
    %246 = vmatprep.subr.mxu0 0.0
    %247 = vmatpush1.msra.mxu0 0.0
    %248 = vmatprep.subr.mxu0 0.0
    %249 = vmatpush1.msra.mxu0 0.0
    %250 = vmatprep.subr.mxu0 0.0
    %251 = vmatpush1.msra.mxu0 0.0
    %252 = vmatprep.subr.mxu0 0.0
    %253 = vmatpush1.msra.mxu0 0.0
    %254 = vmatprep.subr.mxu0 0.0
    %255 = vmatpush1.msra.mxu0 0.0
    %256 = vmatprep.subr.mxu0 0.0
    %257 = vmatpush1.msra.mxu0 0.0
    %258 = vmatprep.subr.mxu0 0.0
    %259 = vmatpush1.msra.mxu0 0.0
    %260 = vmatprep.subr.mxu0 0.0
    %261 = vmatpush1.msra.mxu0 0.0
    %262 = vmatprep.subr.mxu0 0.0
    %263 = vmatpush1.msra.mxu0 0.0
    %264 = vmatprep.subr.mxu0 0.0
    %265 = vmatpush1.msra.mxu0 0.0
    %266 = vmatprep.subr.mxu0 0.0
    %267 = vmatpush1.msra.mxu0 0.0
    %268 = vmatprep.subr.mxu0 0.0
    %269 = vmatpush1.msra.mxu0 0.0
    %270 = vmatprep.subr.mxu0 0.0
    %271 = vmatpush1.msra.mxu0 %v235
    %272 = vmatprep.subr.mxu0 0.0
    %273 = vmatpush1.msra.mxu0 %v234
    %274 = vmatprep.subr.mxu0 0.0
    %275 = vmatpush1.msra.mxu0 %v233
    %276 = vmatprep.subr.mxu0 0.0
    %277 = vmatpush1.msra.mxu0 %v232
    %278 = vmatprep.subr.mxu0 0.0
    %279 = vmatpush2.msra.mxu0 0.0
    %280 = vmatprep.subr.mxu0 0.0
    %281 = vmatpush2.msra.mxu0 0.0
    %282 = vmatprep.subr.mxu0 0.0
    %283 = vmatpush2.msra.mxu0 0.0
    %284 = vmatprep.subr.mxu0 0.0
    %285 = vmatpush2.msra.mxu0 0.0
    %286 = vmatprep.subr.mxu0 0.0
    %287 = vmatpush2.msra.mxu0 0.0
    %288 = vmatprep.subr.mxu0 0.0
    %289 = vmatpush2.msra.mxu0 0.0
    %290 = vmatprep.subr.mxu0 0.0
    %291 = vmatpush2.msra.mxu0 0.0
    %292 = vmatprep.subr.mxu0 0.0
    %293 = vmatpush2.msra.mxu0 0.0
    %294 = vmatprep.subr.mxu0 0.0
    %295 = vmatpush2.msra.mxu0 0.0
    %296 = vmatprep.subr.mxu0 0.0
    %297 = vmatpush2.msra.mxu0 0.0
    %298 = vmatprep.subr.mxu0 0.0
    %299 = vmatpush2.msra.mxu0 0.0
    %300 = vmatprep.subr.mxu0 0.0
    %301 = vmatpush2.msra.mxu0 0.0
    %302 = vmatprep.subr.mxu0 0.0
    %303 = vmatpush2.msra.mxu0 0.0
    %304 = vmatprep.subr.mxu0 0.0
    %305 = vmatpush2.msra.mxu0 0.0
    %306 = vmatprep.subr.mxu0 0.0
    %307 = vmatpush2.msra.mxu0 0.0
    %308 = vmatprep.subr.mxu0 0.0
    %309 = vmatpush2.msra.mxu0 0.0
    %310 = vmatprep.mubr.f32.mxu0 0.0
    %311 = vmatmul.mubr.f32.gmra.mxu0 %v244
    %v312 = vpop.f32.mrf.mxu0
    %v313 = vadd.f32 %v241, %v312
    %v314 = vpop.f32.mrf.mxu0
    %315 = vdwg.mxu0
    %v316 = vld [vmem:[%s9] sm:$0xff]
    %v317 = vld [vmem:[%s9 + $0x8] sm:$0xff]
    %v318 = vld [vmem:[%s9 + $0x10] sm:$0xff]
    %v319 = vld [vmem:[%s9 + $0x18] sm:$0xff]
    %v320 = vld [vmem:[%s10] sm:$0x1]
    %v322 = vlaneseq
    %v323 = vshrl.u32 %v322, 7
    %v324 = vsub.s32 0, %v323
    %v325 = vrot.slane %v320, %v324
    %327 = vmatprep.subr.mxu0 0.0
    %328 = vmatpush1.msra.mxu0 0.0
    %329 = vmatprep.subr.mxu0 0.0
    %330 = vmatpush1.msra.mxu0 0.0
    %331 = vmatprep.subr.mxu0 0.0
    %332 = vmatpush1.msra.mxu0 0.0
    %333 = vmatprep.subr.mxu0 0.0
    %334 = vmatpush1.msra.mxu0 0.0
    %335 = vmatprep.subr.mxu0 0.0
    %336 = vmatpush1.msra.mxu0 0.0
    %337 = vmatprep.subr.mxu0 0.0
    %338 = vmatpush1.msra.mxu0 0.0
    %339 = vmatprep.subr.mxu0 0.0
    %340 = vmatpush1.msra.mxu0 0.0
    %341 = vmatprep.subr.mxu0 0.0
    %342 = vmatpush1.msra.mxu0 0.0
    %343 = vmatprep.subr.mxu0 0.0
    %344 = vmatpush1.msra.mxu0 0.0
    %345 = vmatprep.subr.mxu0 0.0
    %346 = vmatpush1.msra.mxu0 0.0
    %347 = vmatprep.subr.mxu0 0.0
    %348 = vmatpush1.msra.mxu0 0.0
    %349 = vmatprep.subr.mxu0 0.0
    %350 = vmatpush1.msra.mxu0 0.0
    %351 = vmatprep.subr.mxu0 0.0
    %352 = vmatpush1.msra.mxu0 %v319
    %353 = vmatprep.subr.mxu0 0.0
    %354 = vmatpush1.msra.mxu0 %v318
    %355 = vmatprep.subr.mxu0 0.0
    %356 = vmatpush1.msra.mxu0 %v317
    %357 = vmatprep.subr.mxu0 0.0
    %358 = vmatpush1.msra.mxu0 %v316
    %359 = vmatprep.subr.mxu0 0.0
    %360 = vmatpush2.msra.mxu0 0.0
    %361 = vmatprep.subr.mxu0 0.0
    %362 = vmatpush2.msra.mxu0 0.0
    %363 = vmatprep.subr.mxu0 0.0
    %364 = vmatpush2.msra.mxu0 0.0
    %365 = vmatprep.subr.mxu0 0.0
    %366 = vmatpush2.msra.mxu0 0.0
    %367 = vmatprep.subr.mxu0 0.0
    %368 = vmatpush2.msra.mxu0 0.0
    %369 = vmatprep.subr.mxu0 0.0
    %370 = vmatpush2.msra.mxu0 0.0
    %371 = vmatprep.subr.mxu0 0.0
    %372 = vmatpush2.msra.mxu0 0.0
    %373 = vmatprep.subr.mxu0 0.0
    %374 = vmatpush2.msra.mxu0 0.0
    %375 = vmatprep.subr.mxu0 0.0
    %376 = vmatpush2.msra.mxu0 0.0
    %377 = vmatprep.subr.mxu0 0.0
    %378 = vmatpush2.msra.mxu0 0.0
    %379 = vmatprep.subr.mxu0 0.0
    %380 = vmatpush2.msra.mxu0 0.0
    %381 = vmatprep.subr.mxu0 0.0
    %382 = vmatpush2.msra.mxu0 0.0
    %383 = vmatprep.subr.mxu0 0.0
    %384 = vmatpush2.msra.mxu0 0.0
    %385 = vmatprep.subr.mxu0 0.0
    %386 = vmatpush2.msra.mxu0 0.0
    %387 = vmatprep.subr.mxu0 0.0
    %388 = vmatpush2.msra.mxu0 0.0
    %389 = vmatprep.subr.mxu0 0.0
    %390 = vmatpush2.msra.mxu0 0.0
    %391 = vmatprep.mubr.f32.mxu0 0.0
    %392 = vmatmul.mubr.f32.gmra.mxu0 %v244
    %v393 = vpop.f32.mrf.mxu0
    %v394 = vadd.f32 %v325, %v393
    %v395 = vpop.f32.mrf.mxu0
    %396 = vdwg.mxu0
    %vm397 = vcmask 60416
    %398 = vst.msk [vmem:[#allocation2] sm:$0xf] %vm397, %v313
    %v399 = vmax.f32 %v394, -20.0
    %v400 = vmin.f32 %v399, 2.0
    %401 = vst.msk [vmem:[#allocation4] sm:$0xf] %vm397, %v400
    // Predicated region
    $region46: #{tpu_custom_call.1} parent=1 // pred_check
      _
    $region47: #{tpu_custom_call.1} parent=1 // pred_check_branch
      %403 = sbr.rel (0) target = $region49
    $region48: #{tpu_custom_call.1} parent=1 // pred_region
      %s405 = ssub.s32 64, 64
      %406 = vsyncadd [#allocation3], %s405
      %s408 = sshll.u32 [#allocation2], 4
      %s409 = int_to_ptr.vmem [resolvable:$true] %s408
      %411 = dma.vmem_to_hbm [thread:$0]  %s409, 64, %s11, [#allocation3]
    $region49: #{tpu_custom_call.1} parent=1 // pred_fallthru
      _
    // Predicated region
    $region50: #{tpu_custom_call.1} parent=1 // pred_check
      _
    $region51: #{tpu_custom_call.1} parent=1 // pred_check_branch
      %413 = sbr.rel (0) target = $region53
    $region52: #{tpu_custom_call.1} parent=1 // pred_region
      %s415 = ssub.s32 64, 64
      %416 = vsyncadd [#allocation5], %s415
      %s418 = sshll.u32 [#allocation4], 4
      %s419 = int_to_ptr.vmem [resolvable:$true] %s418
      %421 = dma.vmem_to_hbm [thread:$0]  %s419, 64, %s12, [#allocation5]
    $region53: #{tpu_custom_call.1} parent=1 // pred_fallthru
      _
    // Predicated region
    $region54: #{tpu_custom_call.1} parent=1 // pred_check
      _
    $region55: #{tpu_custom_call.1} parent=1 // pred_check_branch
      %423 = sbr.rel (0) target = $region57
    $region56: #{tpu_custom_call.1} parent=1 // pred_region
      %424 = dma.done [#allocation3], 64
    $region57: #{tpu_custom_call.1} parent=1 // pred_fallthru
      _
    // Predicated region
    $region58: #{tpu_custom_call.1} parent=1 // pred_check
      _
    $region59: #{tpu_custom_call.1} parent=1 // pred_check_branch
      %426 = sbr.rel (0) target = $region61
    $region60: #{tpu_custom_call.1} parent=1 // pred_region
      %427 = dma.done [#allocation5], 64
    $region61: #{tpu_custom_call.1} parent=1 // pred_fallthru
      _
    %428 = vsyncpa [#allocation3], 1
    %429 = vsyncpa [#allocation5], 1

</llo_original>
